<compile_context>
chip_gen: v5e
topology: v5e:2x2
jax: 0.10.0
libtpu: 0.0.40
codegen_flags: <defaults>
</compile_context>

<pallas_src>
import functools

import jax
import jax.numpy as jnp
from jax import lax
from jax.experimental import pallas as pl
from jax.experimental.pallas import tpu as pltpu


# ----------------------------------------------------------------------------
# Kernel: one (batch-block, spatial-tile) block of a 1x1 conv + bias.
#   x_ref : (NB, Cin, TS)    activation tile, spatial on the lane axis
#   w_ref : (Cout, Cin)      full weight (resident across the grid)
#   b_ref : (Cout, 1)        bias
#   o_ref : (NB, Cout, TS)   output tile, spatial on the lane axis (lane-dense)
# ----------------------------------------------------------------------------
def _linear1x1_kernel(x_ref, w_ref, b_ref, o_ref, *, nb, cin, use_mxu):
    w = w_ref[...]                                   # (Cout, Cin)
    bias = b_ref[...].astype(jnp.float32)            # (Cout, 1)
    for n in range(nb):                              # NB is small (<= 8), unrolled
        x = x_ref[n]                                 # (Cin, TS)
        if use_mxu:
            # MXU matmul, f32 accumulation (operands fed in their native dtype).
            acc = jnp.dot(w, x, preferred_element_type=jnp.float32)   # (Cout, TS)
        else:
            # Small contraction / few output rows: unrolled VPU FMA loop
            # (outer-product adds) -- skips the MXU entirely.
            acc = w[:, 0:1].astype(jnp.float32) * x[0:1, :].astype(jnp.float32)
            for ci in range(1, cin):
                acc = acc + (w[:, ci:ci + 1].astype(jnp.float32)
                             * x[ci:ci + 1, :].astype(jnp.float32))
        o_ref[n] = (acc + bias).astype(o_ref.dtype)


# ----------------------------------------------------------------------------
# Helpers for budget-driven tiling.
# ----------------------------------------------------------------------------
def _vmem_limit_bytes():
    """Per-generation scoped VMEM limit: ~3/4 of physical, capped at 100 MiB."""
    try:
        phys = int(pltpu.get_tpu_info().vmem_capacity_bytes)
    except Exception:
        phys = 64 * 1024 * 1024          # conservative (v7x-sized) fallback
    return int(min(phys * 3 // 4, 100 * 1024 * 1024))


def _divisors(n):
    return [d for d in range(1, n + 1) if n % d == 0]


# ----------------------------------------------------------------------------
# Wrapper: Linear.forward == 1x1 Conv2d(bias=True) in NCHW layout.
# ----------------------------------------------------------------------------
def linear_forward(x_nchw, w, b, *, kernel_size=1, stride=1, padding=0, groups=1):
    """x_nchw: (N, Cin, H, W); w: (Cout, Cin); b: (Cout,). Returns (N, Cout, H, W)."""
    # TODO(synk): only the module's default configuration (kernel_size=1,
    # stride=1, padding=0, groups=1) is implemented as a Pallas kernel; the
    # depthwise 7x7 usage of Linear elsewhere in mbf.py is not covered here.
    assert kernel_size == 1 and stride == 1 and padding == 0 and groups == 1

    N, Cin, H, W = x_nchw.shape
    Cout = w.shape[0]
    HW = H * W
    itemsize = jnp.dtype(x_nchw.dtype).itemsize

    # Free reshape (contiguous dim merge): spatial goes on the lane axis.
    x3 = x_nchw.reshape(N, Cin, HW)

    # ---- VMEM budget ---------------------------------------------------------
    vmem_limit = _vmem_limit_bytes()
    # Constants (weight + bias); assume 2 copies to stay safe if single-buffering
    # of the constant operands is unavailable.
    const_bytes = 2 * (Cout * Cin + Cout) * max(itemsize, 4)
    budget = max(int(0.40 * vmem_limit) - const_bytes, 0)
    # Per lane cost of one grid step: in tile + out tile, double-buffered.
    per_lane = (Cin + Cout) * itemsize * 2
    max_lanes_total = max(128, budget // per_lane)   # total NB * TS lanes allowed
    # TODO(synk): for extremely large Cin+Cout with a non-128-aligned HW the
    # single full-HW block could exceed the budget; a Cout tile / K grid axis
    # would be needed there.

    # ---- Spatial tile TS (largest multiple of 128 dividing HW under budget) --
    if HW % 128 == 0:
        ts_cap = max(128, min(HW, (max_lanes_total // 128) * 128))
        TS = 128
        for cand in range(ts_cap, 0, -128):
            if HW % cand == 0:
                TS = cand
                break
    else:
        TS = HW          # block last dim must equal the full (unaligned) dim
    n_spatial = HW // TS

    # ---- Batch block NB (amortize per-step overhead on small tiles) ----------
    target_step_bytes = 2 * 1024 * 1024
    max_nb_budget = min(8, max(1, max_lanes_total // TS))   # keep unroll small

    def step_bytes(nb):
        return nb * (Cin + Cout) * TS * itemsize

    NB = 1
    if N > 1:
        min_steps = min(4, N * n_spatial)
        for d in _divisors(N):
            steps = (N // d) * n_spatial
            if d > max_nb_budget or steps < min_steps:
                break
            NB = d
            if step_bytes(d) >= target_step_bytes:
                break
    n_batch = N // NB

    # ---- MXU vs VPU path ------------------------------------------------------
    # HBM-bound op: skip the MXU when it would be badly under-filled.
    use_mxu = (Cin >= 16) and not (Cout <= 16 and Cin <= 32)

    kernel = functools.partial(_linear1x1_kernel, nb=NB, cin=Cin, use_mxu=use_mxu)
    b2d = b.reshape(Cout, 1)

    def _call(single_buffer_consts):
        if single_buffer_consts:
            w_spec = pl.BlockSpec((Cout, Cin), lambda n, s: (0, 0),
                                  pipeline_mode=pl.Buffered(1))
            b_spec = pl.BlockSpec((Cout, 1), lambda n, s: (0, 0),
                                  pipeline_mode=pl.Buffered(1))
        else:
            w_spec = pl.BlockSpec((Cout, Cin), lambda n, s: (0, 0))
            b_spec = pl.BlockSpec((Cout, 1), lambda n, s: (0, 0))
        return pl.pallas_call(
            kernel,
            out_shape=jax.ShapeDtypeStruct((N, Cout, HW), x_nchw.dtype),
            grid=(n_batch, n_spatial),
            in_specs=[
                pl.BlockSpec((NB, Cin, TS), lambda n, s: (n, 0, s)),
                w_spec,
                b_spec,
            ],
            out_specs=pl.BlockSpec((NB, Cout, TS), lambda n, s: (n, 0, s)),
            compiler_params=pltpu.CompilerParams(
                dimension_semantics=("parallel", "parallel"),
                vmem_limit_bytes=vmem_limit,
            ),
        )(x3, w, b2d)

    try:
        out3 = _call(True)
    except Exception:
        # Fallback for JAX versions that reject a 1-deep pipeline buffer.
        out3 = _call(False)

    return out3.reshape(N, Cout, H, W)   # free reshape back to NCHW


# ----------------------------------------------------------------------------
# Pure-JAX reference (mirrors PyTorch nn.Conv2d 1x1 + bias).
# ----------------------------------------------------------------------------
def linear_reference(x_nchw, w, b):
    dn = ("NCHW", "OIHW", "NCHW")
    y = lax.conv_general_dilated(x_nchw, w[:, :, None, None], (1, 1), "VALID",
                                 dimension_numbers=dn)
    return y + b[None, :, None, None]


if __name__ == "__main__":
    key = jax.random.PRNGKey(0)

    # Case 1 (primary, matches the module spec usage): Linear(4, 8) on
    # x of shape (2, 4, 16, 16).  Exercises the VPU FMA path with a
    # lane-dense H*W=256 tile.
    N, Cin, H, W = 2, 4, 16, 16
    Cout = 8
    k1, k2, k3, k4, k5, k6 = jax.random.split(key, 6)
    x = jax.random.normal(k1, (N, Cin, H, W), jnp.float32)
    w = 0.1 * jax.random.normal(k2, (Cout, Cin), jnp.float32)
    b = 0.1 * jax.random.normal(k3, (Cout,), jnp.float32)

    out = jax.block_until_ready(linear_forward(x, w, b))
    ref = jax.block_until_ready(linear_reference(x, w, b))
    assert out.shape == (N, Cout, H, W), out.shape
    assert jnp.allclose(out, ref, rtol=1e-5, atol=1e-5), float(
        jnp.max(jnp.abs(out - ref)))

    # Case 2 (sanity for the non-128-aligned spatial dim / larger Cin):
    # Linear(32, 16) on x of shape (2, 32, 8, 8).
    N2, Cin2, H2, W2, Cout2 = 2, 32, 8, 8, 16
    x2 = jax.random.normal(k4, (N2, Cin2, H2, W2), jnp.float32)
    w2 = 0.1 * jax.random.normal(k5, (Cout2, Cin2), jnp.float32)
    b2 = 0.1 * jax.random.normal(k6, (Cout2,), jnp.float32)

    out2 = jax.block_until_ready(linear_forward(x2, w2, b2))
    ref2 = jax.block_until_ready(linear_reference(x2, w2, b2))
    assert out2.shape == (N2, Cout2, H2, W2), out2.shape
    assert jnp.allclose(out2, ref2, rtol=1e-5, atol=1e-5), float(
        jnp.max(jnp.abs(out2 - ref2)))

    print("KERNEL_OK")
</pallas_src>

<mosaic_0001>
module attributes {stable_mosaic.version = 11 : i64} {
  func.func @_linear1x1_kernel(%arg0: i32, %arg1: i32, %arg2: memref<1x4x256xf32, #tpu.memory_space<vmem>>, %arg3: memref<8x4xf32, #tpu.memory_space<vmem>>, %arg4: memref<8x1xf32, #tpu.memory_space<vmem>>, %arg5: memref<1x8x256xf32, #tpu.memory_space<vmem>>) attributes {dimension_semantics = [#tpu.dimension_semantics<parallel>, #tpu.dimension_semantics<parallel>], iteration_bounds = array<i64: 2, 1>, scalar_prefetch = 0 : i64, scratch_operands = 0 : i64, tpu.core_type = #tpu.core_type<tc>, window_params = [{transform_indices = @transform_0, window_bounds = array<i64: 1, 4, 256>}, {pipeline_mode = #tpu.pipeline_mode<synchronous>, transform_indices = @transform_1, window_bounds = array<i64: 8, 4>}, {pipeline_mode = #tpu.pipeline_mode<synchronous>, transform_indices = @transform_2, window_bounds = array<i64: 8, 1>}, {transform_indices = @transform_3, window_bounds = array<i64: 1, 8, 256>}]} {
    %c0 = arith.constant 0 : index
    %c0_0 = arith.constant 0 : index
    %0 = vector.load %arg3[%c0, %c0_0] : memref<8x4xf32, #tpu.memory_space<vmem>>, vector<8x4xf32>
    %c0_1 = arith.constant 0 : index
    %c0_2 = arith.constant 0 : index
    %1 = vector.load %arg4[%c0_1, %c0_2] : memref<8x1xf32, #tpu.memory_space<vmem>>, vector<8x1xf32>
    %c0_3 = arith.constant 0 : index
    %c0_4 = arith.constant 0 : index
    %c0_5 = arith.constant 0 : index
    %2 = vector.load %arg2[%c0_3, %c0_4, %c0_5] : memref<1x4x256xf32, #tpu.memory_space<vmem>>, vector<1x4x256xf32>
    %3 = vector.shape_cast %2 : vector<1x4x256xf32> to vector<4x256xf32>
    %4 = vector.extract_strided_slice %0 {offsets = [0, 0], sizes = [8, 1], strides = [1, 1]} : vector<8x4xf32> to vector<8x1xf32>
    %5 = vector.extract_strided_slice %3 {offsets = [0, 0], sizes = [1, 256], strides = [1, 1]} : vector<4x256xf32> to vector<1x256xf32>
    %6 = vector.broadcast %4 : vector<8x1xf32> to vector<8x256xf32>
    %7 = vector.broadcast %5 : vector<1x256xf32> to vector<8x256xf32>
    %8 = arith.mulf %6, %7 : vector<8x256xf32>
    %9 = vector.extract_strided_slice %0 {offsets = [0, 1], sizes = [8, 1], strides = [1, 1]} : vector<8x4xf32> to vector<8x1xf32>
    %10 = vector.extract_strided_slice %3 {offsets = [1, 0], sizes = [1, 256], strides = [1, 1]} : vector<4x256xf32> to vector<1x256xf32>
    %11 = vector.broadcast %9 : vector<8x1xf32> to vector<8x256xf32>
    %12 = vector.broadcast %10 : vector<1x256xf32> to vector<8x256xf32>
    %13 = arith.mulf %11, %12 : vector<8x256xf32>
    %14 = arith.addf %8, %13 : vector<8x256xf32>
    %15 = vector.extract_strided_slice %0 {offsets = [0, 2], sizes = [8, 1], strides = [1, 1]} : vector<8x4xf32> to vector<8x1xf32>
    %16 = vector.extract_strided_slice %3 {offsets = [2, 0], sizes = [1, 256], strides = [1, 1]} : vector<4x256xf32> to vector<1x256xf32>
    %17 = vector.broadcast %15 : vector<8x1xf32> to vector<8x256xf32>
    %18 = vector.broadcast %16 : vector<1x256xf32> to vector<8x256xf32>
    %19 = arith.mulf %17, %18 : vector<8x256xf32>
    %20 = arith.addf %14, %19 : vector<8x256xf32>
    %21 = vector.extract_strided_slice %0 {offsets = [0, 3], sizes = [8, 1], strides = [1, 1]} : vector<8x4xf32> to vector<8x1xf32>
    %22 = vector.extract_strided_slice %3 {offsets = [3, 0], sizes = [1, 256], strides = [1, 1]} : vector<4x256xf32> to vector<1x256xf32>
    %23 = vector.broadcast %21 : vector<8x1xf32> to vector<8x256xf32>
    %24 = vector.broadcast %22 : vector<1x256xf32> to vector<8x256xf32>
    %25 = arith.mulf %23, %24 : vector<8x256xf32>
    %26 = arith.addf %20, %25 : vector<8x256xf32>
    %27 = vector.broadcast %1 : vector<8x1xf32> to vector<8x256xf32>
    %28 = arith.addf %26, %27 : vector<8x256xf32>
    %c0_6 = arith.constant 0 : index
    %c0_7 = arith.constant 0 : index
    %c0_8 = arith.constant 0 : index
    %29 = vector.load %arg5[%c0_6, %c0_7, %c0_8] : memref<1x8x256xf32, #tpu.memory_space<vmem>>, vector<1x8x256xf32>
    %30 = vector.shape_cast %29 : vector<1x8x256xf32> to vector<8x256xf32>
    %31 = vector.shape_cast %28 : vector<8x256xf32> to vector<1x8x256xf32>
    tpu.vector_store %arg5[%c0_6, %c0_7, %c0_8], %31 {strides = array<i32>} : memref<1x8x256xf32, #tpu.memory_space<vmem>>, vector<1x8x256xf32>,
    return
  }
  func.func @transform_0(%arg0: i32, %arg1: i32) -> (i32, i32, i32) {
    %c0_i32 = arith.constant 0 : i32
    %c0_i32_0 = arith.constant 0 : i32
    return %arg0, %c0_i32, %arg1 : i32, i32, i32
  }
  func.func @transform_1(%arg0: i32, %arg1: i32) -> (i32, i32) {
    %c0_i32 = arith.constant 0 : i32
    %c0_i32_0 = arith.constant 0 : i32
    %c0_i32_1 = arith.constant 0 : i32
    return %c0_i32, %c0_i32_0 : i32, i32
  }
  func.func @transform_2(%arg0: i32, %arg1: i32) -> (i32, i32) {
    %c0_i32 = arith.constant 0 : i32
    %c0_i32_0 = arith.constant 0 : i32
    %c0_i32_1 = arith.constant 0 : i32
    return %c0_i32, %c0_i32_0 : i32, i32
  }
  func.func @transform_3(%arg0: i32, %arg1: i32) -> (i32, i32, i32) {
    %c0_i32 = arith.constant 0 : i32
    %c0_i32_0 = arith.constant 0 : i32
    return %arg0, %c0_i32, %arg1 : i32, i32, i32
  }
}

module attributes {stable_mosaic.version = 11 : i64} {
  func.func @_linear1x1_kernel(%arg0: i32, %arg1: i32, %arg2: memref<1x4x256xf32, #tpu.memory_space<vmem>>, %arg3: memref<8x4xf32, #tpu.memory_space<vmem>>, %arg4: memref<8x1xf32, #tpu.memory_space<vmem>>, %arg5: memref<1x8x256xf32, #tpu.memory_space<vmem>>) attributes {dimension_semantics = [#tpu.dimension_semantics<parallel>, #tpu.dimension_semantics<parallel>], iteration_bounds = array<i64: 2, 1>, scalar_prefetch = 0 : i64, scratch_operands = 0 : i64, tpu.core_type = #tpu.core_type<tc>, window_params = [{transform_indices = @transform_0, window_bounds = array<i64: 1, 4, 256>}, {pipeline_mode = #tpu.pipeline_mode<synchronous>, transform_indices = @transform_1, window_bounds = array<i64: 8, 4>}, {pipeline_mode = #tpu.pipeline_mode<synchronous>, transform_indices = @transform_2, window_bounds = array<i64: 8, 1>}, {transform_indices = @transform_3, window_bounds = array<i64: 1, 8, 256>}]} {
    %c0 = arith.constant 0 : index
    %c0_0 = arith.constant 0 : index
    %0 = vector.load %arg3[%c0, %c0_0] : memref<8x4xf32, #tpu.memory_space<vmem>>, vector<8x4xf32>
    %c0_1 = arith.constant 0 : index
    %c0_2 = arith.constant 0 : index
    %1 = vector.load %arg4[%c0_1, %c0_2] : memref<8x1xf32, #tpu.memory_space<vmem>>, vector<8x1xf32>
    %c0_3 = arith.constant 0 : index
    %c0_4 = arith.constant 0 : index
    %c0_5 = arith.constant 0 : index
    %2 = vector.load %arg2[%c0_3, %c0_4, %c0_5] : memref<1x4x256xf32, #tpu.memory_space<vmem>>, vector<1x4x256xf32>
    %3 = vector.shape_cast %2 : vector<1x4x256xf32> to vector<4x256xf32>
    %4 = vector.extract_strided_slice %0 {offsets = [0, 0], sizes = [8, 1], strides = [1, 1]} : vector<8x4xf32> to vector<8x1xf32>
    %5 = vector.extract_strided_slice %3 {offsets = [0, 0], sizes = [1, 256], strides = [1, 1]} : vector<4x256xf32> to vector<1x256xf32>
    %6 = vector.broadcast %4 : vector<8x1xf32> to vector<8x256xf32>
    %7 = vector.broadcast %5 : vector<1x256xf32> to vector<8x256xf32>
    %8 = arith.mulf %6, %7 : vector<8x256xf32>
    %9 = vector.extract_strided_slice %0 {offsets = [0, 1], sizes = [8, 1], strides = [1, 1]} : vector<8x4xf32> to vector<8x1xf32>
    %10 = vector.extract_strided_slice %3 {offsets = [1, 0], sizes = [1, 256], strides = [1, 1]} : vector<4x256xf32> to vector<1x256xf32>
    %11 = vector.broadcast %9 : vector<8x1xf32> to vector<8x256xf32>
    %12 = vector.broadcast %10 : vector<1x256xf32> to vector<8x256xf32>
    %13 = arith.mulf %11, %12 : vector<8x256xf32>
    %14 = arith.addf %8, %13 : vector<8x256xf32>
    %15 = vector.extract_strided_slice %0 {offsets = [0, 2], sizes = [8, 1], strides = [1, 1]} : vector<8x4xf32> to vector<8x1xf32>
    %16 = vector.extract_strided_slice %3 {offsets = [2, 0], sizes = [1, 256], strides = [1, 1]} : vector<4x256xf32> to vector<1x256xf32>
    %17 = vector.broadcast %15 : vector<8x1xf32> to vector<8x256xf32>
    %18 = vector.broadcast %16 : vector<1x256xf32> to vector<8x256xf32>
    %19 = arith.mulf %17, %18 : vector<8x256xf32>
    %20 = arith.addf %14, %19 : vector<8x256xf32>
    %21 = vector.extract_strided_slice %0 {offsets = [0, 3], sizes = [8, 1], strides = [1, 1]} : vector<8x4xf32> to vector<8x1xf32>
    %22 = vector.extract_strided_slice %3 {offsets = [3, 0], sizes = [1, 256], strides = [1, 1]} : vector<4x256xf32> to vector<1x256xf32>
    %23 = vector.broadcast %21 : vector<8x1xf32> to vector<8x256xf32>
    %24 = vector.broadcast %22 : vector<1x256xf32> to vector<8x256xf32>
    %25 = arith.mulf %23, %24 : vector<8x256xf32>
    %26 = arith.addf %20, %25 : vector<8x256xf32>
    %27 = vector.broadcast %1 : vector<8x1xf32> to vector<8x256xf32>
    %28 = arith.addf %26, %27 : vector<8x256xf32>
    %c0_6 = arith.constant 0 : index
    %c0_7 = arith.constant 0 : index
    %c0_8 = arith.constant 0 : index
    %29 = vector.load %arg5[%c0_6, %c0_7, %c0_8] : memref<1x8x256xf32, #tpu.memory_space<vmem>>, vector<1x8x256xf32>
    %30 = vector.shape_cast %29 : vector<1x8x256xf32> to vector<8x256xf32>
    %31 = vector.shape_cast %28 : vector<8x256xf32> to vector<1x8x256xf32>
    tpu.vector_store %arg5[%c0_6, %c0_7, %c0_8], %31 {strides = array<i32>} : memref<1x8x256xf32, #tpu.memory_space<vmem>>, vector<1x8x256xf32>,
    return
  }
  func.func @transform_0(%arg0: i32, %arg1: i32) -> (i32, i32, i32) {
    %c0_i32 = arith.constant 0 : i32
    %c0_i32_0 = arith.constant 0 : i32
    return %arg0, %c0_i32, %arg1 : i32, i32, i32
  }
  func.func @transform_1(%arg0: i32, %arg1: i32) -> (i32, i32) {
    %c0_i32 = arith.constant 0 : i32
    %c0_i32_0 = arith.constant 0 : i32
    %c0_i32_1 = arith.constant 0 : i32
    return %c0_i32, %c0_i32_0 : i32, i32
  }
  func.func @transform_2(%arg0: i32, %arg1: i32) -> (i32, i32) {
    %c0_i32 = arith.constant 0 : i32
    %c0_i32_0 = arith.constant 0 : i32
    %c0_i32_1 = arith.constant 0 : i32
    return %c0_i32, %c0_i32_0 : i32, i32
  }
  func.func @transform_3(%arg0: i32, %arg1: i32) -> (i32, i32, i32) {
    %c0_i32 = arith.constant 0 : i32
    %c0_i32_0 = arith.constant 0 : i32
    return %arg0, %c0_i32, %arg1 : i32, i32, i32
  }
}

</mosaic_0001>

<llo_original>
// kernel: tpu_custom_call.1
$region0: #{tpu_custom_call.1}
  #allocation0 [shape = 'u32[]', space=smem, size = 0x4, offset = 0x4, fixed_abs, tag = 'smem constant byte address 0x4 - core index']
  #allocation1 [shape = 'u32[72,128]{1,0:T(1,128)}', space=vmem, size = 0x9000, scoped, tag = 'internal scratch']
  %s0 = inlined_call_operand.vmem [shape: f32[2,4,256], index: 0, kind: input, shape index: {}]
  %s1 = inlined_call_operand.vmem [shape: f32[8,4], index: 1, kind: input, shape index: {}]
  %s2 = inlined_call_operand.vmem [shape: f32[8,1], index: 2, kind: input, shape index: {}]
  %s3 = inlined_call_operand.hbm [shape: f32[2,8,256], index: 3, kind: output, shape index: {}]
  %s4 = sld [smem:[#allocation0]]
  $region45: #{tpu_custom_call.1} parent=0
    _
  %s6 = ssub.s32 1, %s4
  %s7 = scalar_select 0, %s6, %s4
  $region1: #{tpu_custom_call.1} parent=0
    #allocation2 [shape = 'u8[16384]{0}', space=vmem, size = 0x4000, scoped, tag = 'output window, operand 0']
    #allocation3 [shape = 's32[2]{0}', space=sflag, size = 0x8, scoped, tag = 'scoped memory for tpu_custom_call.1']
    %8 = vsyncpa [#allocation3], 0
    %s9 = scalar_lea.sflag [#allocation3], 1
    %10 = vsyncpa %s9, 0
    loop: start=0, step=1, limit=4
    $region2: #{tpu_custom_call.1} parent=1 // loop_pre_header
      _
    $region3: #{tpu_custom_call.1} parent=1 // loop_header
      %s12 = sphi 0, %s16
      %p13 = scmp.ge.s32.totalorder %s12, 4
      %s19 = sphi 0, %s31
      %s20 = sphi 0, %s27
      %s21 = sphi 0, %s19
      %s22 = sphi 0, %s20
      %s23 = sphi 0, %s21
      %s24 = sphi 0, %s22
      %s36 = sphi 0, %s38
      %s39 = sphi 0, %s36
      %s40 = sphi 0, %s39
      %s56 = sphi 0, %s40
      %s60 = sphi 0, %s60
      %s62 = sphi 0, %s60
      %s63 = sphi 0, %s62
      %s77 = sphi 0, %s63
      %s81 = sphi 0, %s81
      %s83 = sphi 0, %s81
      %s84 = sphi 0, %s83
      %s98 = sphi 0, %s84
      %s106 = sphi 0, %s108
      %s109 = sphi 0, %s106
      %s110 = sphi 0, %s109
      %s126 = sphi 0, %s110
    $region4: #{tpu_custom_call.1} parent=1 // loop_header_branch
      %15 = sbr.rel (%p13) target = $region8
    $region5: #{tpu_custom_call.1} parent=1 // loop_body
      %s17 = ssub.s32 %s12, 1
      %s18 = ssub.s32 %s12, 2
      %s25 = sadd.s32 1, %s20
      %p26 = scmp.ge.s32.totalorder %s25, 1
      %s27 = scalar_select %p26, 0, %s25
      %s28 = sadd.s32 1, %s19
      %s29 = scalar_select %p26, %s28, %s19
      %p30 = scmp.ge.s32.totalorder %s29, 2
      %s31 = scalar_select %p30, 0, %s29
      %s32 = ssub.s32 %s19, %s31
      %s33 = ssub.s32 %s20, %s27
      %s34 = sor.u32 %s32, %s33
      %p35 = scmp.eq.s32.totalorder %s34, 0
      %s37 = sadd.s32 %s36, 1
      %s38 = scalar_select %p35, %s36, %s37
      %p41 = pneg %p35
      %p42 = scmp.eq.s32.totalorder %s12, 1
      %p43 = por %p41, %p42
      %p44 = scmp.ne.s32.totalorder %s36, %s39
      %p45 = scmp.eq.s32.totalorder %s12, 0
      %p46 = por %p44, %p45
      %p47 = scmp.ne.s32.totalorder %s36, %s39
      %p48 = scmp.eq.s32.totalorder %s17, 1
      %p49 = por %p47, %p48
      %p50 = scmp.ne.s32.totalorder %s39, %s40
      %p51 = scmp.eq.s32.totalorder %s17, 0
      %p52 = por %p50, %p51
      %p53 = scmp.ne.s32.totalorder %s39, %s40
      %p54 = scmp.eq.s32.totalorder %s18, 1
      %p55 = por %p53, %p54
      %p57 = scmp.ne.s32.totalorder %s40, %s56
      %p58 = scmp.eq.s32.totalorder %s18, 0
      %p59 = por %p57, %p58
      %s61 = sadd.s32 %s60, 1
      %p64 = scmp.eq.s32.totalorder %s12, 1
      %p65 = scmp.ne.s32.totalorder %s60, %s62
      %p66 = scmp.eq.s32.totalorder %s12, 0
      %p67 = por %p65, %p66
      %p68 = scmp.ne.s32.totalorder %s60, %s62
      %p69 = scmp.eq.s32.totalorder %s17, 1
      %p70 = por %p68, %p69
      %p71 = scmp.ne.s32.totalorder %s62, %s63
      %p72 = scmp.eq.s32.totalorder %s17, 0
      %p73 = por %p71, %p72
      %p74 = scmp.ne.s32.totalorder %s62, %s63
      %p75 = scmp.eq.s32.totalorder %s18, 1
      %p76 = por %p74, %p75
      %p78 = scmp.ne.s32.totalorder %s63, %s77
      %p79 = scmp.eq.s32.totalorder %s18, 0
      %p80 = por %p78, %p79
      %s82 = sadd.s32 %s81, 1
      %p85 = scmp.eq.s32.totalorder %s12, 1
      %p86 = scmp.ne.s32.totalorder %s81, %s83
      %p87 = scmp.eq.s32.totalorder %s12, 0
      %p88 = por %p86, %p87
      %p89 = scmp.ne.s32.totalorder %s81, %s83
      %p90 = scmp.eq.s32.totalorder %s17, 1
      %p91 = por %p89, %p90
      %p92 = scmp.ne.s32.totalorder %s83, %s84
      %p93 = scmp.eq.s32.totalorder %s17, 0
      %p94 = por %p92, %p93
      %p95 = scmp.ne.s32.totalorder %s83, %s84
      %p96 = scmp.eq.s32.totalorder %s18, 1
      %p97 = por %p95, %p96
      %p99 = scmp.ne.s32.totalorder %s84, %s98
      %p100 = scmp.eq.s32.totalorder %s18, 0
      %p101 = por %p99, %p100
      %s102 = ssub.s32 %s19, %s31
      %s103 = ssub.s32 %s20, %s27
      %s104 = sor.u32 %s102, %s103
      %p105 = scmp.eq.s32.totalorder %s104, 0
      %s107 = sadd.s32 %s106, 1
      %s108 = scalar_select %p105, %s106, %s107
      %p111 = pneg %p105
      %p112 = scmp.eq.s32.totalorder %s12, 1
      %p113 = por %p111, %p112
      %p114 = scmp.ne.s32.totalorder %s106, %s109
      %p115 = scmp.eq.s32.totalorder %s12, 0
      %p116 = por %p114, %p115
      %p117 = scmp.ne.s32.totalorder %s106, %s109
      %p118 = scmp.eq.s32.totalorder %s17, 1
      %p119 = por %p117, %p118
      %p120 = scmp.ne.s32.totalorder %s109, %s110
      %p121 = scmp.eq.s32.totalorder %s17, 0
      %p122 = por %p120, %p121
      %p123 = scmp.ne.s32.totalorder %s109, %s110
      %p124 = scmp.eq.s32.totalorder %s18, 1
      %p125 = por %p123, %p124
      %p127 = scmp.ne.s32.totalorder %s110, %s126
      %p128 = scmp.eq.s32.totalorder %s18, 0
      %p129 = por %p127, %p128
      %p130 = scmp.le.s32.totalorder 1, %s12
      %p131 = scmp.lt.s32.totalorder %s12, 3
      %p132 = pnand %p130, %p131
      %p133 = pneg %p132
      // Predicated region
      $region9: #{tpu_custom_call.1} parent=5 // pred_check
        _
      $region10: #{tpu_custom_call.1} parent=5 // pred_check_branch
        %135 = sbr.rel (%p132) target = $region12
      $region11: #{tpu_custom_call.1} parent=5 // pred_region
        %s136 = ssub.s32 %s12, 1
        // Predicated region
        $region13: #{tpu_custom_call.1} parent=11 // pred_check
          %p137 = pneg %p73
        $region14: #{tpu_custom_call.1} parent=11 // pred_check_branch
          %139 = sbr.rel (%p137) target = $region16
        $region15: #{tpu_custom_call.1} parent=11 // pred_region
          _
        $region16: #{tpu_custom_call.1} parent=11 // pred_fallthru
          _
        // Predicated region
        $region17: #{tpu_custom_call.1} parent=11 // pred_check
          %p140 = pneg %p94
        $region18: #{tpu_custom_call.1} parent=11 // pred_check_branch
          %142 = sbr.rel (%p140) target = $region20
        $region19: #{tpu_custom_call.1} parent=11 // pred_region
          _
        $region20: #{tpu_custom_call.1} parent=11 // pred_fallthru
          _
      $region12: #{tpu_custom_call.1} parent=5 // pred_fallthru
        _
      %p143 = scmp.lt.s32.totalorder %s12, 2
      // Predicated region
      $region21: #{tpu_custom_call.1} parent=5 // pred_check
        %p144 = pneg %p143
      $region22: #{tpu_custom_call.1} parent=5 // pred_check_branch
        %146 = sbr.rel (%p144) target = $region24
      $region23: #{tpu_custom_call.1} parent=5 // pred_region
        // Predicated region
        $region25: #{tpu_custom_call.1} parent=23 // pred_check
          %p147 = pneg %p46
        $region26: #{tpu_custom_call.1} parent=23 // pred_check_branch
          %149 = sbr.rel (%p147) target = $region28
        $region27: #{tpu_custom_call.1} parent=23 // pred_region
          %s150 = smul.u32 2, %s20
          %p151 = scmp.lt.s32.totalorder %s19, 1
          %s152 = scalar_select %p151, %s19, 1
          %p153 = scmp.lt.s32.totalorder %s150, 1
          %s154 = scalar_select %p153, %s150, 1
          %s155 = smul.addr %s152, 2
          %s156 = sadd.s32 %s154, %s155
          %s157 = smul.addr %s156, 4
          %s158 = scalar_lea.vmem %s0, %s157
          %s159 = smul.u32 2, %s20
        $region28: #{tpu_custom_call.1} parent=23 // pred_fallthru
          _
      $region24: #{tpu_custom_call.1} parent=5 // pred_fallthru
        _
      %p160 = scmp.le.s32.totalorder 1, %s12
      %p161 = scmp.lt.s32.totalorder %s12, 3
      %p162 = pnand %p160, %p161
      %p163 = pneg %p162
      // Predicated region
      $region29: #{tpu_custom_call.1} parent=5 // pred_check
        _
      $region30: #{tpu_custom_call.1} parent=5 // pred_check_branch
        %165 = sbr.rel (%p162) target = $region32
      $region31: #{tpu_custom_call.1} parent=5 // pred_region
        %s166 = ssub.s32 %s12, 1
        %s167 = smul.u32 2, %s22
        %p168 = scmp.lt.s32.totalorder %s21, 1
        %s169 = scalar_select %p168, %s21, 1
        %p170 = scmp.lt.s32.totalorder %s167, 1
        %s171 = scalar_select %p170, %s167, 1
        %s172 = smul.addr %s169, 2
        %s173 = sadd.s32 %s171, %s172
        %s174 = smul.addr %s173, 4
        %s175 = scalar_lea.vmem %s0, %s174
        %p176 = pneg %p52
        %p177 = pneg %p49
        %p178 = pneg %p73
        %p179 = pneg %p70
        %p180 = pneg %p94
        %p181 = pneg %p91
        %p182 = pneg %p122
        %p183 = pneg %p119
        %s184 = sand.u32 %s109, 1
        %s185 = scalar_lea.sflag [#allocation3], %s184
        %s186 = sand.u32 %s109, 1
        %s187 = smul.addr %s186, 16
        %s188 = scalar_lea.vmem [#allocation2], %s187
        %s189 = smul.u32 2, %s22
        %p190 = scmp.lt.s32.totalorder %s21, 1
        %s191 = scalar_select %p190, %s21, 1
        %p192 = scmp.lt.s32.totalorder %s189, 1
        %s193 = scalar_select %p192, %s189, 1
        %s194 = smul.addr %s191, 2
        %s195 = sadd.s32 %s193, %s194
        %s196 = smul.addr %s195, 4
        %s197 = scalar_lea.vmem %s0, %s196
        %s198 = smul.u32 2, %s22
        %s199 = smul.u32 2, %s22
        %v200 = vld [vmem:[%s1] sm:$0xff]
        %v201 = vld [vmem:[%s2] sm:$0xff]
        %v202 = vld [vmem:[%s197] sm:$0xff]
        %204 = vset.pattern.permute.xlu0 0
        %205 = vperm.xlu0 %204, %v200
        %v206 = vpop.permute.xlu0 %205
        %v209 = vperm.slane %v202, 0
        %v210 = vperm.slane %v202, 4
        %v213 = vperm.slane %v209, 0
        %v214 = vperm.slane %v210, 0
        %v215 = vmul.f32 %v206, %v213
        %v216 = vmul.f32 %v206, %v214
        %217 = vset.pattern.permute.xlu0 1
        %218 = vperm.xlu0 %217, %v200
        %v219 = vpop.permute.xlu0 %218
        %v221 = vperm.slane %v202, 1
        %v222 = vperm.slane %v202, 5
        %v225 = vperm.slane %v221, 1
        %v226 = vperm.slane %v222, 1
        %v227 = vmul.f32 %v219, %v225
        %v228 = vmul.f32 %v219, %v226
        %v229 = vadd.f32 %v215, %v227
        %v230 = vadd.f32 %v216, %v228
        %231 = vset.pattern.permute.xlu0 2
        %232 = vperm.xlu0 %231, %v200
        %v233 = vpop.permute.xlu0 %232
        %v235 = vperm.slane %v202, 2
        %v236 = vperm.slane %v202, 6
        %v239 = vperm.slane %v235, 2
        %v240 = vperm.slane %v236, 2
        %v241 = vmul.f32 %v233, %v239
        %v242 = vmul.f32 %v233, %v240
        %v243 = vadd.f32 %v229, %v241
        %v244 = vadd.f32 %v230, %v242
        %245 = vset.pattern.permute.xlu0 3
        %246 = vperm.xlu0 %245, %v200
        %v247 = vpop.permute.xlu0 %246
        %v249 = vperm.slane %v202, 3
        %v250 = vperm.slane %v202, 7
        %v253 = vperm.slane %v249, 3
        %v254 = vperm.slane %v250, 3
        %v255 = vmul.f32 %v247, %v253
        %v256 = vmul.f32 %v247, %v254
        %v257 = vadd.f32 %v243, %v255
        %v258 = vadd.f32 %v244, %v256
        %260 = vset.pattern.permute.xlu0 0
        %261 = vperm.xlu0 %260, %v201
        %v262 = vpop.permute.xlu0 %261
        %v264 = vadd.f32 %v257, %v262
        %v265 = vadd.f32 %v258, %v262
        %266 = vst [vmem:[%s188] sm:$0xff] %v264
        %267 = vst [vmem:[%s188 + $0x8] sm:$0xff] %v265
        %s268 = sand.u32 %s109, 1
        %s269 = scalar_lea.sflag [#allocation3], %s268
        %s270 = sand.u32 %s109, 1
        %s271 = smul.addr %s270, 16
        %s272 = scalar_lea.vmem [#allocation2], %s271
        // Predicated region
        $region33: #{tpu_custom_call.1} parent=31 // pred_check
          %p273 = pneg %p119
        $region34: #{tpu_custom_call.1} parent=31 // pred_check_branch
          %275 = sbr.rel (%p273) target = $region36
        $region35: #{tpu_custom_call.1} parent=31 // pred_region
          %s276 = smul.u32 2, %s22
          %278 = vsyncadd %s269, 0
          %s279 = smul.addr %s21, 2
          %s280 = sadd.s32 %s276, %s279
          %s281 = smul.addr %s280, 8
          %s282 = scalar_lea.hbm %s3, %s281
          %s284 = sshll.u32 %s272, 4
          %s285 = int_to_ptr.vmem [resolvable:$true] %s284
          %s286 = sshll.u32 %s282, 4
          %s287 = int_to_ptr.hbm [resolvable:$true] %s286
          %289 = dma.vmem_to_hbm [thread:$0]  %s285, 256, %s287, %s269
        $region36: #{tpu_custom_call.1} parent=31 // pred_fallthru
          _
      $region32: #{tpu_custom_call.1} parent=5 // pred_fallthru
        _
      %p290 = scmp.le.s32.totalorder 2, %s12
      // Predicated region
      $region37: #{tpu_custom_call.1} parent=5 // pred_check
        %p291 = pneg %p290
      $region38: #{tpu_custom_call.1} parent=5 // pred_check_branch
        %293 = sbr.rel (%p291) target = $region40
      $region39: #{tpu_custom_call.1} parent=5 // pred_region
        %s294 = ssub.s32 %s12, 2
        // Predicated region
        $region41: #{tpu_custom_call.1} parent=39 // pred_check
          %p295 = pneg %p125
        $region42: #{tpu_custom_call.1} parent=39 // pred_check_branch
          %297 = sbr.rel (%p295) target = $region44
        $region43: #{tpu_custom_call.1} parent=39 // pred_region
          %s298 = sand.u32 %s110, 1
          %s299 = scalar_lea.sflag [#allocation3], %s298
          %s300 = sand.u32 %s110, 1
          %s301 = smul.addr %s300, 16
          %s302 = scalar_lea.vmem [#allocation2], %s301
          %304 = dma.done %s299, 256
        $region44: #{tpu_custom_call.1} parent=39 // pred_fallthru
          _
      $region40: #{tpu_custom_call.1} parent=5 // pred_fallthru
        _
    $region6: #{tpu_custom_call.1} parent=1 // loop_footer
      %s16 = sadd.s32 1, %s12
    $region7: #{tpu_custom_call.1} parent=1 // loop_footer_branch
      %11 = sbr.rel target = $region3
    $region8: #{tpu_custom_call.1} parent=1 // loop_exit
      _
    %305 = vsyncpa [#allocation3], 1
    %s306 = scalar_lea.sflag [#allocation3], 1
    %307 = vsyncpa %s306, 1

// kernel: tpu_custom_call.1
$region0: #{tpu_custom_call.1}
  #allocation0 [shape = 'u32[]', space=smem, size = 0x4, offset = 0x4, fixed_abs, tag = 'smem constant byte address 0x4 - core index']
  #allocation1 [shape = 'u32[72,128]{1,0:T(1,128)}', space=vmem, size = 0x9000, scoped, tag = 'internal scratch']
  %s0 = inlined_call_operand.vmem [shape: f32[2,4,256], index: 0, kind: input, shape index: {}]
  %s1 = inlined_call_operand.vmem [shape: f32[8,4], index: 1, kind: input, shape index: {}]
  %s2 = inlined_call_operand.vmem [shape: f32[8,1], index: 2, kind: input, shape index: {}]
  %s3 = inlined_call_operand.hbm [shape: f32[2,8,256], index: 3, kind: output, shape index: {}]
  %s4 = sld [smem:[#allocation0]]
  $region45: #{tpu_custom_call.1} parent=0
    _
  %s6 = ssub.s32 1, %s4
  %s7 = scalar_select 0, %s6, %s4
  $region1: #{tpu_custom_call.1} parent=0
    #allocation2 [shape = 'u8[16384]{0}', space=vmem, size = 0x4000, scoped, tag = 'output window, operand 0']
    #allocation3 [shape = 's32[2]{0}', space=sflag, size = 0x8, scoped, tag = 'scoped memory for tpu_custom_call.1']
    %8 = vsyncpa [#allocation3], 0
    %s9 = scalar_lea.sflag [#allocation3], 1
    %10 = vsyncpa %s9, 0
    loop: start=0, step=1, limit=4
    $region2: #{tpu_custom_call.1} parent=1 // loop_pre_header
      _
    $region3: #{tpu_custom_call.1} parent=1 // loop_header
      %s12 = sphi 0, %s16
      %p13 = scmp.ge.s32.totalorder %s12, 4
      %s19 = sphi 0, %s31
      %s20 = sphi 0, %s27
      %s21 = sphi 0, %s19
      %s22 = sphi 0, %s20
      %s23 = sphi 0, %s21
      %s24 = sphi 0, %s22
      %s36 = sphi 0, %s38
      %s39 = sphi 0, %s36
      %s40 = sphi 0, %s39
      %s56 = sphi 0, %s40
      %s60 = sphi 0, %s60
      %s62 = sphi 0, %s60
      %s63 = sphi 0, %s62
      %s77 = sphi 0, %s63
      %s81 = sphi 0, %s81
      %s83 = sphi 0, %s81
      %s84 = sphi 0, %s83
      %s98 = sphi 0, %s84
      %s106 = sphi 0, %s108
      %s109 = sphi 0, %s106
      %s110 = sphi 0, %s109
      %s126 = sphi 0, %s110
    $region4: #{tpu_custom_call.1} parent=1 // loop_header_branch
      %15 = sbr.rel (%p13) target = $region8
    $region5: #{tpu_custom_call.1} parent=1 // loop_body
      %s17 = ssub.s32 %s12, 1
      %s18 = ssub.s32 %s12, 2
      %s25 = sadd.s32 1, %s20
      %p26 = scmp.ge.s32.totalorder %s25, 1
      %s27 = scalar_select %p26, 0, %s25
      %s28 = sadd.s32 1, %s19
      %s29 = scalar_select %p26, %s28, %s19
      %p30 = scmp.ge.s32.totalorder %s29, 2
      %s31 = scalar_select %p30, 0, %s29
      %s32 = ssub.s32 %s19, %s31
      %s33 = ssub.s32 %s20, %s27
      %s34 = sor.u32 %s32, %s33
      %p35 = scmp.eq.s32.totalorder %s34, 0
      %s37 = sadd.s32 %s36, 1
      %s38 = scalar_select %p35, %s36, %s37
      %p41 = pneg %p35
      %p42 = scmp.eq.s32.totalorder %s12, 1
      %p43 = por %p41, %p42
      %p44 = scmp.ne.s32.totalorder %s36, %s39
      %p45 = scmp.eq.s32.totalorder %s12, 0
      %p46 = por %p44, %p45
      %p47 = scmp.ne.s32.totalorder %s36, %s39
      %p48 = scmp.eq.s32.totalorder %s17, 1
      %p49 = por %p47, %p48
      %p50 = scmp.ne.s32.totalorder %s39, %s40
      %p51 = scmp.eq.s32.totalorder %s17, 0
      %p52 = por %p50, %p51
      %p53 = scmp.ne.s32.totalorder %s39, %s40
      %p54 = scmp.eq.s32.totalorder %s18, 1
      %p55 = por %p53, %p54
      %p57 = scmp.ne.s32.totalorder %s40, %s56
      %p58 = scmp.eq.s32.totalorder %s18, 0
      %p59 = por %p57, %p58
      %s61 = sadd.s32 %s60, 1
      %p64 = scmp.eq.s32.totalorder %s12, 1
      %p65 = scmp.ne.s32.totalorder %s60, %s62
      %p66 = scmp.eq.s32.totalorder %s12, 0
      %p67 = por %p65, %p66
      %p68 = scmp.ne.s32.totalorder %s60, %s62
      %p69 = scmp.eq.s32.totalorder %s17, 1
      %p70 = por %p68, %p69
      %p71 = scmp.ne.s32.totalorder %s62, %s63
      %p72 = scmp.eq.s32.totalorder %s17, 0
      %p73 = por %p71, %p72
      %p74 = scmp.ne.s32.totalorder %s62, %s63
      %p75 = scmp.eq.s32.totalorder %s18, 1
      %p76 = por %p74, %p75
      %p78 = scmp.ne.s32.totalorder %s63, %s77
      %p79 = scmp.eq.s32.totalorder %s18, 0
      %p80 = por %p78, %p79
      %s82 = sadd.s32 %s81, 1
      %p85 = scmp.eq.s32.totalorder %s12, 1
      %p86 = scmp.ne.s32.totalorder %s81, %s83
      %p87 = scmp.eq.s32.totalorder %s12, 0
      %p88 = por %p86, %p87
      %p89 = scmp.ne.s32.totalorder %s81, %s83
      %p90 = scmp.eq.s32.totalorder %s17, 1
      %p91 = por %p89, %p90
      %p92 = scmp.ne.s32.totalorder %s83, %s84
      %p93 = scmp.eq.s32.totalorder %s17, 0
      %p94 = por %p92, %p93
      %p95 = scmp.ne.s32.totalorder %s83, %s84
      %p96 = scmp.eq.s32.totalorder %s18, 1
      %p97 = por %p95, %p96
      %p99 = scmp.ne.s32.totalorder %s84, %s98
      %p100 = scmp.eq.s32.totalorder %s18, 0
      %p101 = por %p99, %p100
      %s102 = ssub.s32 %s19, %s31
      %s103 = ssub.s32 %s20, %s27
      %s104 = sor.u32 %s102, %s103
      %p105 = scmp.eq.s32.totalorder %s104, 0
      %s107 = sadd.s32 %s106, 1
      %s108 = scalar_select %p105, %s106, %s107
      %p111 = pneg %p105
      %p112 = scmp.eq.s32.totalorder %s12, 1
      %p113 = por %p111, %p112
      %p114 = scmp.ne.s32.totalorder %s106, %s109
      %p115 = scmp.eq.s32.totalorder %s12, 0
      %p116 = por %p114, %p115
      %p117 = scmp.ne.s32.totalorder %s106, %s109
      %p118 = scmp.eq.s32.totalorder %s17, 1
      %p119 = por %p117, %p118
      %p120 = scmp.ne.s32.totalorder %s109, %s110
      %p121 = scmp.eq.s32.totalorder %s17, 0
      %p122 = por %p120, %p121
      %p123 = scmp.ne.s32.totalorder %s109, %s110
      %p124 = scmp.eq.s32.totalorder %s18, 1
      %p125 = por %p123, %p124
      %p127 = scmp.ne.s32.totalorder %s110, %s126
      %p128 = scmp.eq.s32.totalorder %s18, 0
      %p129 = por %p127, %p128
      %p130 = scmp.le.s32.totalorder 1, %s12
      %p131 = scmp.lt.s32.totalorder %s12, 3
      %p132 = pnand %p130, %p131
      %p133 = pneg %p132
      // Predicated region
      $region9: #{tpu_custom_call.1} parent=5 // pred_check
        _
      $region10: #{tpu_custom_call.1} parent=5 // pred_check_branch
        %135 = sbr.rel (%p132) target = $region12
      $region11: #{tpu_custom_call.1} parent=5 // pred_region
        %s136 = ssub.s32 %s12, 1
        // Predicated region
        $region13: #{tpu_custom_call.1} parent=11 // pred_check
          %p137 = pneg %p73
        $region14: #{tpu_custom_call.1} parent=11 // pred_check_branch
          %139 = sbr.rel (%p137) target = $region16
        $region15: #{tpu_custom_call.1} parent=11 // pred_region
          _
        $region16: #{tpu_custom_call.1} parent=11 // pred_fallthru
          _
        // Predicated region
        $region17: #{tpu_custom_call.1} parent=11 // pred_check
          %p140 = pneg %p94
        $region18: #{tpu_custom_call.1} parent=11 // pred_check_branch
          %142 = sbr.rel (%p140) target = $region20
        $region19: #{tpu_custom_call.1} parent=11 // pred_region
          _
        $region20: #{tpu_custom_call.1} parent=11 // pred_fallthru
          _
      $region12: #{tpu_custom_call.1} parent=5 // pred_fallthru
        _
      %p143 = scmp.lt.s32.totalorder %s12, 2
      // Predicated region
      $region21: #{tpu_custom_call.1} parent=5 // pred_check
        %p144 = pneg %p143
      $region22: #{tpu_custom_call.1} parent=5 // pred_check_branch
        %146 = sbr.rel (%p144) target = $region24
      $region23: #{tpu_custom_call.1} parent=5 // pred_region
        // Predicated region
        $region25: #{tpu_custom_call.1} parent=23 // pred_check
          %p147 = pneg %p46
        $region26: #{tpu_custom_call.1} parent=23 // pred_check_branch
          %149 = sbr.rel (%p147) target = $region28
        $region27: #{tpu_custom_call.1} parent=23 // pred_region
          %s150 = smul.u32 2, %s20
          %p151 = scmp.lt.s32.totalorder %s19, 1
          %s152 = scalar_select %p151, %s19, 1
          %p153 = scmp.lt.s32.totalorder %s150, 1
          %s154 = scalar_select %p153, %s150, 1
          %s155 = smul.addr %s152, 2
          %s156 = sadd.s32 %s154, %s155
          %s157 = smul.addr %s156, 4
          %s158 = scalar_lea.vmem %s0, %s157
          %s159 = smul.u32 2, %s20
        $region28: #{tpu_custom_call.1} parent=23 // pred_fallthru
          _
      $region24: #{tpu_custom_call.1} parent=5 // pred_fallthru
        _
      %p160 = scmp.le.s32.totalorder 1, %s12
      %p161 = scmp.lt.s32.totalorder %s12, 3
      %p162 = pnand %p160, %p161
      %p163 = pneg %p162
      // Predicated region
      $region29: #{tpu_custom_call.1} parent=5 // pred_check
        _
      $region30: #{tpu_custom_call.1} parent=5 // pred_check_branch
        %165 = sbr.rel (%p162) target = $region32
      $region31: #{tpu_custom_call.1} parent=5 // pred_region
        %s166 = ssub.s32 %s12, 1
        %s167 = smul.u32 2, %s22
        %p168 = scmp.lt.s32.totalorder %s21, 1
        %s169 = scalar_select %p168, %s21, 1
        %p170 = scmp.lt.s32.totalorder %s167, 1
        %s171 = scalar_select %p170, %s167, 1
        %s172 = smul.addr %s169, 2
        %s173 = sadd.s32 %s171, %s172
        %s174 = smul.addr %s173, 4
        %s175 = scalar_lea.vmem %s0, %s174
        %p176 = pneg %p52
        %p177 = pneg %p49
        %p178 = pneg %p73
        %p179 = pneg %p70
        %p180 = pneg %p94
        %p181 = pneg %p91
        %p182 = pneg %p122
        %p183 = pneg %p119
        %s184 = sand.u32 %s109, 1
        %s185 = scalar_lea.sflag [#allocation3], %s184
        %s186 = sand.u32 %s109, 1
        %s187 = smul.addr %s186, 16
        %s188 = scalar_lea.vmem [#allocation2], %s187
        %s189 = smul.u32 2, %s22
        %p190 = scmp.lt.s32.totalorder %s21, 1
        %s191 = scalar_select %p190, %s21, 1
        %p192 = scmp.lt.s32.totalorder %s189, 1
        %s193 = scalar_select %p192, %s189, 1
        %s194 = smul.addr %s191, 2
        %s195 = sadd.s32 %s193, %s194
        %s196 = smul.addr %s195, 4
        %s197 = scalar_lea.vmem %s0, %s196
        %s198 = smul.u32 2, %s22
        %s199 = smul.u32 2, %s22
        %v200 = vld [vmem:[%s1] sm:$0xff]
        %v201 = vld [vmem:[%s2] sm:$0xff]
        %v202 = vld [vmem:[%s197] sm:$0xff]
        %204 = vset.pattern.permute.xlu0 0
        %205 = vperm.xlu0 %204, %v200
        %v206 = vpop.permute.xlu0 %205
        %v209 = vperm.slane %v202, 0
        %v210 = vperm.slane %v202, 4
        %v213 = vperm.slane %v209, 0
        %v214 = vperm.slane %v210, 0
        %v215 = vmul.f32 %v206, %v213
        %v216 = vmul.f32 %v206, %v214
        %217 = vset.pattern.permute.xlu0 1
        %218 = vperm.xlu0 %217, %v200
        %v219 = vpop.permute.xlu0 %218
        %v221 = vperm.slane %v202, 1
        %v222 = vperm.slane %v202, 5
        %v225 = vperm.slane %v221, 1
        %v226 = vperm.slane %v222, 1
        %v227 = vmul.f32 %v219, %v225
        %v228 = vmul.f32 %v219, %v226
        %v229 = vadd.f32 %v215, %v227
        %v230 = vadd.f32 %v216, %v228
        %231 = vset.pattern.permute.xlu0 2
        %232 = vperm.xlu0 %231, %v200
        %v233 = vpop.permute.xlu0 %232
        %v235 = vperm.slane %v202, 2
        %v236 = vperm.slane %v202, 6
        %v239 = vperm.slane %v235, 2
        %v240 = vperm.slane %v236, 2
        %v241 = vmul.f32 %v233, %v239
        %v242 = vmul.f32 %v233, %v240
        %v243 = vadd.f32 %v229, %v241
        %v244 = vadd.f32 %v230, %v242
        %245 = vset.pattern.permute.xlu0 3
        %246 = vperm.xlu0 %245, %v200
        %v247 = vpop.permute.xlu0 %246
        %v249 = vperm.slane %v202, 3
        %v250 = vperm.slane %v202, 7
        %v253 = vperm.slane %v249, 3
        %v254 = vperm.slane %v250, 3
        %v255 = vmul.f32 %v247, %v253
        %v256 = vmul.f32 %v247, %v254
        %v257 = vadd.f32 %v243, %v255
        %v258 = vadd.f32 %v244, %v256
        %260 = vset.pattern.permute.xlu0 0
        %261 = vperm.xlu0 %260, %v201
        %v262 = vpop.permute.xlu0 %261
        %v264 = vadd.f32 %v257, %v262
        %v265 = vadd.f32 %v258, %v262
        %266 = vst [vmem:[%s188] sm:$0xff] %v264
        %267 = vst [vmem:[%s188 + $0x8] sm:$0xff] %v265
        %s268 = sand.u32 %s109, 1
        %s269 = scalar_lea.sflag [#allocation3], %s268
        %s270 = sand.u32 %s109, 1
        %s271 = smul.addr %s270, 16
        %s272 = scalar_lea.vmem [#allocation2], %s271
        // Predicated region
        $region33: #{tpu_custom_call.1} parent=31 // pred_check
          %p273 = pneg %p119
        $region34: #{tpu_custom_call.1} parent=31 // pred_check_branch
          %275 = sbr.rel (%p273) target = $region36
        $region35: #{tpu_custom_call.1} parent=31 // pred_region
          %s276 = smul.u32 2, %s22
          %278 = vsyncadd %s269, 0
          %s279 = smul.addr %s21, 2
          %s280 = sadd.s32 %s276, %s279
          %s281 = smul.addr %s280, 8
          %s282 = scalar_lea.hbm %s3, %s281
          %s284 = sshll.u32 %s272, 4
          %s285 = int_to_ptr.vmem [resolvable:$true] %s284
          %s286 = sshll.u32 %s282, 4
          %s287 = int_to_ptr.hbm [resolvable:$true] %s286
          %289 = dma.vmem_to_hbm [thread:$0]  %s285, 256, %s287, %s269
        $region36: #{tpu_custom_call.1} parent=31 // pred_fallthru
          _
      $region32: #{tpu_custom_call.1} parent=5 // pred_fallthru
        _
      %p290 = scmp.le.s32.totalorder 2, %s12
      // Predicated region
      $region37: #{tpu_custom_call.1} parent=5 // pred_check
        %p291 = pneg %p290
      $region38: #{tpu_custom_call.1} parent=5 // pred_check_branch
        %293 = sbr.rel (%p291) target = $region40
      $region39: #{tpu_custom_call.1} parent=5 // pred_region
        %s294 = ssub.s32 %s12, 2
        // Predicated region
        $region41: #{tpu_custom_call.1} parent=39 // pred_check
          %p295 = pneg %p125
        $region42: #{tpu_custom_call.1} parent=39 // pred_check_branch
          %297 = sbr.rel (%p295) target = $region44
        $region43: #{tpu_custom_call.1} parent=39 // pred_region
          %s298 = sand.u32 %s110, 1
          %s299 = scalar_lea.sflag [#allocation3], %s298
          %s300 = sand.u32 %s110, 1
          %s301 = smul.addr %s300, 16
          %s302 = scalar_lea.vmem [#allocation2], %s301
          %304 = dma.done %s299, 256
        $region44: #{tpu_custom_call.1} parent=39 // pred_fallthru
          _
      $region40: #{tpu_custom_call.1} parent=5 // pred_fallthru
        _
    $region6: #{tpu_custom_call.1} parent=1 // loop_footer
      %s16 = sadd.s32 1, %s12
    $region7: #{tpu_custom_call.1} parent=1 // loop_footer_branch
      %11 = sbr.rel target = $region3
    $region8: #{tpu_custom_call.1} parent=1 // loop_exit
      _
    %305 = vsyncpa [#allocation3], 1
    %s306 = scalar_lea.sflag [#allocation3], 1
    %307 = vsyncpa %s306, 1

</llo_original>
